<compile_context>
chip_gen: v7x
topology: tpu7x:2x2x1
jax: 0.10.0
libtpu: 0.0.40
codegen_flags: <defaults>
</compile_context>

<pallas_src>
import jax
import jax.numpy as jnp
from jax.experimental import pallas as pl
from jax.experimental.pallas import tpu as pltpu

_LANE = 128
_MAX_LANE_TILE = 2048          # lane-tile cap (multiple of 128)
_TILE_BYTE_BUDGET = 2 << 20    # bytes per input tile; double-buffered in+out
                               # stays well under v5e's 16 MiB scoped default
_VMEM_LIMIT = 32 << 20         # <= scoped/physical VMEM on v5e/v6e/v7x


def _internal_chain(x):
    # start_block -> downsample -> internal_block -> upsample -> end_block.
    # All nn.Identity() in the default UNetBaseBlock configuration.
    # TODO(synk): plug real sub-block kernels here once they are not Identity;
    # spatially-mixing blocks (convs, resampling) will need halo-aware tiling
    # instead of this purely elementwise fusion.
    return x


# ---------------- kernels ----------------

def _add_skip_kernel(x_ref, o_ref):
    # AddSkipConn : y = x + chain(x)
    x = x_ref[...]
    o_ref[...] = x + _internal_chain(x)


def _concat_skip_kernel(x_ref, o_ref):
    # ConcatSkipConn : y = cat([x, chain(x)], channel dim)
    # x_ref block: (bn, tc); o_ref block: (bn, 2, tc).
    # Both halves are full, lane-dense slabs starting at sublane 0 — no
    # misaligned sublane-offset stores.
    x = x_ref[...]
    o_ref[:, 0, :] = x
    o_ref[:, 1, :] = _internal_chain(x)


# ---------------- tile selection ----------------

def _sublane_align(dtype):
    # Sub-32-bit dtypes pack along sublanes: f32 -> 8 rows/vreg, bf16 -> 16,
    # int8/fp8 -> 32.
    itemsize = jnp.dtype(dtype).itemsize
    return {4: 8, 2: 16, 1: 32}.get(itemsize, 8)


def _pick_lane_tile(cols):
    # Full dim if it fits, otherwise a large 128-multiple (edge tile masked).
    if cols <= _MAX_LANE_TILE:
        return cols
    return _MAX_LANE_TILE


def _pick_row_tile(rows, lane_tile, dtype):
    # Biggest row tile that keeps one input tile within the byte budget,
    # dtype-aware sublane alignment; full dim when it fits (always legal).
    item = jnp.dtype(dtype).itemsize
    align = _sublane_align(dtype)
    max_rows = max(1, _TILE_BYTE_BUDGET // max(1, lane_tile * item))
    if rows <= max_rows:
        return rows
    tr = (max_rows // align) * align
    if tr < align:
        tr = align
    return rows if tr >= rows else tr


def _maybe_split_for_two_cores(grid_rows, cols, lane_tile):
    # v7x has 2 TensorCores; a 1-step grid leaves one idle.  Split the lane
    # axis when possible (keeps every block a multiple of 128 lanes).
    if grid_rows * pl.cdiv(cols, lane_tile) > 1:
        return lane_tile
    if cols >= 2 * _LANE:
        return max(_LANE, ((cols // 2) // _LANE) * _LANE)
    return lane_tile


def _flatten_for_add(x):
    # Elementwise op: any contiguous reshape is metadata-only.  Pick the
    # flattening that maximizes the lane dimension (multiple of 128, divisor
    # of the total size, capped at _MAX_LANE_TILE).
    total = x.size
    if total % _LANE == 0:
        cols = min(total, _MAX_LANE_TILE)
        cols = (cols // _LANE) * _LANE
        while cols > _LANE and total % cols != 0:
            cols -= _LANE
        if cols >= _LANE and total % cols == 0:
            return x.reshape(total // cols, cols)
    # Fallback (total not a multiple of 128): (N*C, H*W); edge tiles masked.
    n, c, h, w = x.shape
    return x.reshape(n * c, h * w)


# ---------------- wrapper ----------------

def unet_base_block(x, use_connection=None, donate_input=False):
    """x: (N, C, H, W) (NCHW, matching the PyTorch module)."""
    N, C, H, W = x.shape
    dtype = x.dtype

    if use_connection is None:
        # Identity chain, no skip wrapper: forward(x) == x.  No kernel at all
        # (a pallas_call here would just be a full HBM read+write for a no-op).
        return x

    if use_connection == "add":
        x2 = _flatten_for_add(x)                       # metadata-only reshape
        rows, cols = x2.shape
        tc = _pick_lane_tile(cols)
        tr = _pick_row_tile(rows, tc, dtype)
        tc = _maybe_split_for_two_cores(pl.cdiv(rows, tr), cols, tc)
        grid = (pl.cdiv(rows, tr), pl.cdiv(cols, tc))
        extra = {}
        if donate_input:
            # Caller promises not to use x afterwards: reuse its HBM buffer.
            extra["input_output_aliases"] = {0: 0}
        out = pl.pallas_call(
            _add_skip_kernel,
            out_shape=jax.ShapeDtypeStruct((rows, cols), dtype),
            grid=grid,
            in_specs=[pl.BlockSpec((tr, tc), lambda i, j: (i, j))],
            out_specs=pl.BlockSpec((tr, tc), lambda i, j: (i, j)),
            compiler_params=pltpu.CompilerParams(
                dimension_semantics=("parallel", "parallel"),
                vmem_limit_bytes=_VMEM_LIMIT),
            **extra,
        )(x2)
        return out.reshape(N, C, H, W)

    if use_connection == "concat":
        chw = C * H * W
        x2 = x.reshape(N, chw)                         # lane-dense, contiguous
        tc = _pick_lane_tile(chw)
        bn = _pick_row_tile(N, tc, dtype)              # out tile is 2x in tile
        tc = _maybe_split_for_two_cores(pl.cdiv(N, bn), chw, tc)
        grid = (pl.cdiv(N, bn), pl.cdiv(chw, tc))
        out = pl.pallas_call(
            _concat_skip_kernel,
            out_shape=jax.ShapeDtypeStruct((N, 2, chw), dtype),
            grid=grid,
            # x read exactly once per tile; both output halves written from
            # the same grid step as full slabs -> no duplicate input DMA, no
            # sublane-offset masked stores, no trailing XLA transpose.
            in_specs=[pl.BlockSpec((bn, tc), lambda n, j: (n, j))],
            out_specs=pl.BlockSpec((bn, 2, tc), lambda n, j: (n, 0, j)),
            compiler_params=pltpu.CompilerParams(
                dimension_semantics=("parallel", "parallel"),
                vmem_limit_bytes=_VMEM_LIMIT),
        )(x2)
        # (N, 2, C*H*W) -> (N, 2C, H, W): contiguous reshape, metadata only.
        return out.reshape(N, 2 * C, H, W)

    raise ValueError(f"unknown use_connection: {use_connection!r}")


if __name__ == "__main__":
    key = jax.random.PRNGKey(0)
    x = jax.random.normal(key, (2, 4, 16, 16), dtype=jnp.float32)

    # Default UNetBaseBlock(): all Identity blocks, no skip connection.
    y_none = jax.block_until_ready(unet_base_block(x, use_connection=None))
    assert y_none.shape == (2, 4, 16, 16)
    assert jnp.allclose(y_none, x)

    # 'add' skip connection: y = x + net(x) = 2x (net is identity).
    y_add = jax.block_until_ready(unet_base_block(x, use_connection="add"))
    assert y_add.shape == (2, 4, 16, 16)
    assert jnp.allclose(y_add, x + x)

    # 'concat' skip connection: y = cat([x, net(x)], dim=1).
    y_cat = jax.block_until_ready(unet_base_block(x, use_connection="concat"))
    assert y_cat.shape == (2, 8, 16, 16)
    assert jnp.allclose(y_cat, jnp.concatenate([x, x], axis=1))

    print("KERNEL_OK")
</pallas_src>

<mosaic_0001>
module attributes {stable_mosaic.version = 11 : i64} {
  func.func @_add_skip_kernel(%arg0: i32, %arg1: i32, %arg2: memref<1x1024xf32, #tpu.memory_space<vmem>>, %arg3: memref<1x1024xf32, #tpu.memory_space<vmem>>) attributes {dimension_semantics = [#tpu.dimension_semantics<parallel>, #tpu.dimension_semantics<parallel>], iteration_bounds = array<i64: 1, 2>, scalar_prefetch = 0 : i64, scratch_operands = 0 : i64, tpu.core_type = #tpu.core_type<tc>, window_params = [{transform_indices = @transform_0, window_bounds = array<i64: 1, 1024>}, {transform_indices = @transform_1, window_bounds = array<i64: 1, 1024>}]} {
    %c0 = arith.constant 0 : index
    %c0_0 = arith.constant 0 : index
    %0 = vector.load %arg2[%c0, %c0_0] : memref<1x1024xf32, #tpu.memory_space<vmem>>, vector<1x1024xf32>
    %1 = arith.addf %0, %0 : vector<1x1024xf32>
    %c0_1 = arith.constant 0 : index
    %c0_2 = arith.constant 0 : index
    %2 = vector.load %arg3[%c0_1, %c0_2] : memref<1x1024xf32, #tpu.memory_space<vmem>>, vector<1x1024xf32>
    tpu.vector_store %arg3[%c0_1, %c0_2], %1 {strides = array<i32>} : memref<1x1024xf32, #tpu.memory_space<vmem>>, vector<1x1024xf32>,
    return
  }
  func.func @transform_0(%arg0: i32, %arg1: i32) -> (i32, i32) {
    %c0_i32 = arith.constant 0 : i32
    return %arg0, %arg1 : i32, i32
  }
  func.func @transform_1(%arg0: i32, %arg1: i32) -> (i32, i32) {
    %c0_i32 = arith.constant 0 : i32
    return %arg0, %arg1 : i32, i32
  }
}

</mosaic_0001>

<llo_original>
// kernel: tpu_custom_call.1
$region0: #{tpu_custom_call.1}
  #allocation0 [shape = 'u32[]', space=smem, size = 0x4, offset = 0x4, fixed_abs, tag = 'smem constant byte address 0x4 - core index']
  #allocation1 [shape = 'u32[144,128]{1,0:T(1,128)}', space=vmem, size = 0x12000, scoped, tag = 'internal scratch']
  %s0 = inlined_call_operand.hbm [shape: f32[1,2048], index: 0, kind: input, shape index: {}]
  %s1 = inlined_call_operand.hbm [shape: f32[1,2048], index: 1, kind: output, shape index: {}]
  %s2 = sld [smem:[#allocation0]]
  $region41: #{tpu_custom_call.1} parent=0
    _
  %s4 = ssub.s32 1, %s2
  %s5 = scalar_select 0, %s4, %s2
  $region1: #{tpu_custom_call.1} parent=0
    #allocation2 [shape = 'u8[8192]{0}', space=vmem, size = 0x2000, scoped, tag = 'input window, operand 0']
    #allocation3 [shape = 's32[2]{0}', space=sflag, size = 0x8, scoped, tag = 'scoped memory for tpu_custom_call.1']
    #allocation4 [shape = 's32[2]{0}', space=sflag, size = 0x8, scoped, tag = 'scoped memory for tpu_custom_call.1']
    #allocation5 [shape = 'u8[8192]{0}', space=vmem, size = 0x2000, scoped, tag = 'output window, operand 0']
    %6 = vsyncpa [#allocation3], 0
    %s7 = scalar_lea.sflag [#allocation3], 1
    %8 = vsyncpa %s7, 0
    %9 = vsyncpa [#allocation4], 0
    %s10 = scalar_lea.sflag [#allocation4], 1
    %11 = vsyncpa %s10, 0
    loop: start=0, step=1, limit=4
    $region2: #{tpu_custom_call.1} parent=1 // loop_pre_header
      _
    $region3: #{tpu_custom_call.1} parent=1 // loop_header
      %s13 = sphi 0, %s17
      %p14 = scmp.ge.s32.totalorder %s13, 4
      %s20 = sphi 0, %s32
      %s21 = sphi 0, %s28
      %s22 = sphi 0, %s20
      %s23 = sphi 0, %s21
      %s24 = sphi 0, %s22
      %s25 = sphi 0, %s23
      %s37 = sphi 0, %s39
      %s40 = sphi 0, %s37
      %s41 = sphi 0, %s40
      %s57 = sphi 0, %s41
      %s65 = sphi 0, %s67
      %s68 = sphi 0, %s65
      %s69 = sphi 0, %s68
      %s85 = sphi 0, %s69
    $region4: #{tpu_custom_call.1} parent=1 // loop_header_branch
      %16 = sbr.rel (%p14) target = $region8
    $region5: #{tpu_custom_call.1} parent=1 // loop_body
      %s18 = ssub.s32 %s13, 1
      %s19 = ssub.s32 %s13, 2
      %s26 = sadd.s32 1, %s21
      %p27 = scmp.ge.s32.totalorder %s26, 2
      %s28 = scalar_select %p27, 0, %s26
      %s29 = sadd.s32 1, %s20
      %s30 = scalar_select %p27, %s29, %s20
      %p31 = scmp.ge.s32.totalorder %s30, 1
      %s32 = scalar_select %p31, 0, %s30
      %s33 = ssub.s32 %s20, %s32
      %s34 = ssub.s32 %s21, %s28
      %s35 = sor.u32 %s33, %s34
      %p36 = scmp.eq.s32.totalorder %s35, 0
      %s38 = sadd.s32 %s37, 1
      %s39 = scalar_select %p36, %s37, %s38
      %p42 = pneg %p36
      %p43 = scmp.eq.s32.totalorder %s13, 1
      %p44 = por %p42, %p43
      %p45 = scmp.ne.s32.totalorder %s37, %s40
      %p46 = scmp.eq.s32.totalorder %s13, 0
      %p47 = por %p45, %p46
      %p48 = scmp.ne.s32.totalorder %s37, %s40
      %p49 = scmp.eq.s32.totalorder %s18, 1
      %p50 = por %p48, %p49
      %p51 = scmp.ne.s32.totalorder %s40, %s41
      %p52 = scmp.eq.s32.totalorder %s18, 0
      %p53 = por %p51, %p52
      %p54 = scmp.ne.s32.totalorder %s40, %s41
      %p55 = scmp.eq.s32.totalorder %s19, 1
      %p56 = por %p54, %p55
      %p58 = scmp.ne.s32.totalorder %s41, %s57
      %p59 = scmp.eq.s32.totalorder %s19, 0
      %p60 = por %p58, %p59
      %s61 = ssub.s32 %s20, %s32
      %s62 = ssub.s32 %s21, %s28
      %s63 = sor.u32 %s61, %s62
      %p64 = scmp.eq.s32.totalorder %s63, 0
      %s66 = sadd.s32 %s65, 1
      %s67 = scalar_select %p64, %s65, %s66
      %p70 = pneg %p64
      %p71 = scmp.eq.s32.totalorder %s13, 1
      %p72 = por %p70, %p71
      %p73 = scmp.ne.s32.totalorder %s65, %s68
      %p74 = scmp.eq.s32.totalorder %s13, 0
      %p75 = por %p73, %p74
      %p76 = scmp.ne.s32.totalorder %s65, %s68
      %p77 = scmp.eq.s32.totalorder %s18, 1
      %p78 = por %p76, %p77
      %p79 = scmp.ne.s32.totalorder %s68, %s69
      %p80 = scmp.eq.s32.totalorder %s18, 0
      %p81 = por %p79, %p80
      %p82 = scmp.ne.s32.totalorder %s68, %s69
      %p83 = scmp.eq.s32.totalorder %s19, 1
      %p84 = por %p82, %p83
      %p86 = scmp.ne.s32.totalorder %s69, %s85
      %p87 = scmp.eq.s32.totalorder %s19, 0
      %p88 = por %p86, %p87
      %p89 = scmp.le.s32.totalorder 1, %s13
      %p90 = scmp.lt.s32.totalorder %s13, 3
      %p91 = pnand %p89, %p90
      %p92 = pneg %p91
      // Predicated region
      $region9: #{tpu_custom_call.1} parent=5 // pred_check
        _
      $region10: #{tpu_custom_call.1} parent=5 // pred_check_branch
        %94 = sbr.rel (%p91) target = $region12
      $region11: #{tpu_custom_call.1} parent=5 // pred_region
        %s95 = ssub.s32 %s13, 1
      $region12: #{tpu_custom_call.1} parent=5 // pred_fallthru
        _
      %p96 = scmp.lt.s32.totalorder %s13, 2
      // Predicated region
      $region13: #{tpu_custom_call.1} parent=5 // pred_check
        %p97 = pneg %p96
      $region14: #{tpu_custom_call.1} parent=5 // pred_check_branch
        %99 = sbr.rel (%p97) target = $region16
      $region15: #{tpu_custom_call.1} parent=5 // pred_region
        // Predicated region
        $region17: #{tpu_custom_call.1} parent=15 // pred_check
          %p100 = pneg %p47
        $region18: #{tpu_custom_call.1} parent=15 // pred_check_branch
          %102 = sbr.rel (%p100) target = $region20
        $region19: #{tpu_custom_call.1} parent=15 // pred_region
          %s103 = sand.u32 %s37, 1
          %s104 = scalar_lea.sflag [#allocation3], %s103
          %s105 = sand.u32 %s37, 1
          %s106 = smul.addr %s105, 8
          %s107 = scalar_lea.vmem [#allocation2], %s106
          %s108 = smul.u32 8, %s21
          %s110 = ssub.s32 128, 128
          %111 = vsyncadd %s104, %s110
          %s112 = smul.addr %s20, 16
          %s113 = sadd.s32 %s108, %s112
          %s114 = smul.addr %s113, 16
          %s115 = scalar_lea.hbm %s0, %s114
          %s117 = sshll.u32 %s107, 4
          %s118 = int_to_ptr.vmem [resolvable:$true] %s117
          %120 = dma.hbm_to_vmem [thread:$0]  %s115, 128, %s118, %s104
        $region20: #{tpu_custom_call.1} parent=15 // pred_fallthru
          _
      $region16: #{tpu_custom_call.1} parent=5 // pred_fallthru
        _
      %p121 = scmp.le.s32.totalorder 1, %s13
      %p122 = scmp.lt.s32.totalorder %s13, 3
      %p123 = pnand %p121, %p122
      %p124 = pneg %p123
      // Predicated region
      $region21: #{tpu_custom_call.1} parent=5 // pred_check
        _
      $region22: #{tpu_custom_call.1} parent=5 // pred_check_branch
        %126 = sbr.rel (%p123) target = $region24
      $region23: #{tpu_custom_call.1} parent=5 // pred_region
        %s127 = ssub.s32 %s13, 1
        %s128 = sand.u32 %s40, 1
        %s129 = scalar_lea.sflag [#allocation3], %s128
        %s130 = sand.u32 %s40, 1
        %s131 = smul.addr %s130, 8
        %s132 = scalar_lea.vmem [#allocation2], %s131
        // Predicated region
        $region25: #{tpu_custom_call.1} parent=23 // pred_check
          %p133 = pneg %p53
        $region26: #{tpu_custom_call.1} parent=23 // pred_check_branch
          %135 = sbr.rel (%p133) target = $region28
        $region27: #{tpu_custom_call.1} parent=23 // pred_region
          %136 = dma.done %s129, 128
        $region28: #{tpu_custom_call.1} parent=23 // pred_fallthru
          _
        %s137 = sand.u32 %s40, 1
        %s138 = scalar_lea.sflag [#allocation3], %s137
        %s139 = sand.u32 %s40, 1
        %s140 = smul.addr %s139, 8
        %s141 = scalar_lea.vmem [#allocation2], %s140
        %p142 = pneg %p53
        %p143 = pneg %p50
        %p144 = pneg %p81
        %p145 = pneg %p78
        %s146 = sand.u32 %s68, 1
        %s147 = scalar_lea.sflag [#allocation4], %s146
        %s148 = sand.u32 %s68, 1
        %s149 = smul.addr %s148, 8
        %s150 = scalar_lea.vmem [#allocation5], %s149
        %s151 = smul.u32 8, %s23
        %s152 = smul.u32 8, %s23
        %v153 = vld [vmem:[%s132] sm:$0xff]
        %v154 = vadd.f32 %v153, %v153
        %155 = vst [vmem:[%s150] sm:$0xff] %v154
        %s156 = sand.u32 %s68, 1
        %s157 = scalar_lea.sflag [#allocation4], %s156
        %s158 = sand.u32 %s68, 1
        %s159 = smul.addr %s158, 8
        %s160 = scalar_lea.vmem [#allocation5], %s159
        // Predicated region
        $region29: #{tpu_custom_call.1} parent=23 // pred_check
          %p161 = pneg %p78
        $region30: #{tpu_custom_call.1} parent=23 // pred_check_branch
          %163 = sbr.rel (%p161) target = $region32
        $region31: #{tpu_custom_call.1} parent=23 // pred_region
          %s164 = smul.u32 8, %s23
          %s166 = ssub.s32 128, 128
          %167 = vsyncadd %s157, %s166
          %s168 = smul.addr %s22, 16
          %s169 = sadd.s32 %s164, %s168
          %s170 = smul.addr %s169, 16
          %s171 = scalar_lea.hbm %s1, %s170
          %s173 = sshll.u32 %s160, 4
          %s174 = int_to_ptr.vmem [resolvable:$true] %s173
          %176 = dma.vmem_to_hbm [thread:$0]  %s174, 128, %s171, %s157
        $region32: #{tpu_custom_call.1} parent=23 // pred_fallthru
          _
      $region24: #{tpu_custom_call.1} parent=5 // pred_fallthru
        _
      %p177 = scmp.le.s32.totalorder 2, %s13
      // Predicated region
      $region33: #{tpu_custom_call.1} parent=5 // pred_check
        %p178 = pneg %p177
      $region34: #{tpu_custom_call.1} parent=5 // pred_check_branch
        %180 = sbr.rel (%p178) target = $region36
      $region35: #{tpu_custom_call.1} parent=5 // pred_region
        %s181 = ssub.s32 %s13, 2
        // Predicated region
        $region37: #{tpu_custom_call.1} parent=35 // pred_check
          %p182 = pneg %p84
        $region38: #{tpu_custom_call.1} parent=35 // pred_check_branch
          %184 = sbr.rel (%p182) target = $region40
        $region39: #{tpu_custom_call.1} parent=35 // pred_region
          %s185 = sand.u32 %s69, 1
          %s186 = scalar_lea.sflag [#allocation4], %s185
          %s187 = sand.u32 %s69, 1
          %s188 = smul.addr %s187, 8
          %s189 = scalar_lea.vmem [#allocation5], %s188
          %190 = dma.done %s186, 128
        $region40: #{tpu_custom_call.1} parent=35 // pred_fallthru
          _
      $region36: #{tpu_custom_call.1} parent=5 // pred_fallthru
        _
    $region6: #{tpu_custom_call.1} parent=1 // loop_footer
      %s17 = sadd.s32 1, %s13
    $region7: #{tpu_custom_call.1} parent=1 // loop_footer_branch
      %12 = sbr.rel target = $region3
    $region8: #{tpu_custom_call.1} parent=1 // loop_exit
      _
    %191 = vsyncpa [#allocation3], 1
    %s192 = scalar_lea.sflag [#allocation3], 1
    %193 = vsyncpa %s192, 1
    %194 = vsyncpa [#allocation4], 1
    %s195 = scalar_lea.sflag [#allocation4], 1
    %196 = vsyncpa %s195, 1

</llo_original>
